<compile_context>
chip_gen: v5e
topology: v5e:2x2
jax: 0.10.0
libtpu: 0.0.40
codegen_flags: <defaults>
</compile_context>

<pallas_src>
import functools
import math

import jax
import jax.numpy as jnp
from jax.experimental import pallas as pl
from jax.experimental.pallas import tpu as pltpu


def _round_up(x, m):
    return (x + m - 1) // m * m


def _cdiv(a, b):
    return (a + b - 1) // b


_LOG_EPS = math.log(1e-8)


# ---------------------------------------------------------------------------
# Pallas kernel: fused softmax focal loss + fg/bg weighting + partial reduce
# ---------------------------------------------------------------------------
def _ddn_loss_kernel(logits_ref, aux_ref, out_ref, *, gamma, hw, tile, ragged):
    t = pl.program_id(2)

    @pl.when(t == 0)
    def _():
        out_ref[...] = jnp.zeros_like(out_ref)

    x = logits_ref[...].astype(jnp.float32)        # (C, T) depth logits
    aux = aux_ref[...]                             # (3, T) f32
    tgt = aux[0:1, :].astype(jnp.int32)            # (1, T) target bin index

    C, T = x.shape

    # ---- numerically-stable softmax / log-softmax over the channel axis -----
    m = jnp.max(x, axis=0, keepdims=True)          # (1, T)   XLU
    xm = x - m                                     # (C, T)   VPU (reused twice)
    e = jnp.exp(xm)                                # (C, T)   EUP
    s = jnp.sum(e, axis=0, keepdims=True)          # (1, T)   XLU
    inv_s = pl.reciprocal(s, approx=True)          # (1, T)   EUP (cheap slot)
    log_s = jnp.log(s)                             # (1, T)   EUP
    p = e * inv_s                                  # (C, T) softmax probs
    # log-softmax floored at log(1e-8) ~ kornia's log(softmax + 1e-8)
    logp = jnp.maximum(xm - log_s, jnp.float32(_LOG_EPS))     # (C, T)

    om = 1.0 - p
    if float(gamma) == 2.0:
        w = om * om                                # safe even if p ~ 1 + ulp
    else:
        # clamp: approx reciprocal can push p slightly above 1
        w = jnp.power(jnp.maximum(om, 0.0), gamma)
    focal = w * logp                               # (C, T); -alpha folded into aux weights

    # (one_hot(tgt) + 1e-6) contraction without materializing the one-hot
    cls_ids = jax.lax.broadcasted_iota(jnp.int32, (C, T), 0)
    tgt_focal = jnp.sum(jnp.where(cls_ids == tgt, focal, 0.0),
                        axis=0, keepdims=True)                 # (1, T)
    sum_focal = jnp.sum(focal, axis=0, keepdims=True)          # (1, T)
    loss_px = tgt_focal + jnp.float32(1e-6) * sum_focal        # (1, T)

    # fg / bg weighted partial sums; weights carry -alpha * {fg,bg}_weight
    contrib = loss_px * aux[1:3, :]                             # (2, T)

    if ragged:
        # last tile extends past HW: mask garbage lanes (0 * NaN would be NaN,
        # so use a select, not a multiply)
        lane = jax.lax.broadcasted_iota(jnp.int32, (2, T), 1)
        start = (pl.program_id(0) * pl.num_programs(2) + t) * tile
        contrib = jnp.where(start + lane < hw, contrib, 0.0)

    out_ref[...] += contrib


# ---------------------------------------------------------------------------
# JAX glue: paint target depth map + foreground mask from 2D boxes
# (data-dependent scatter; no clean Pallas equivalent)
# ---------------------------------------------------------------------------
def _build_depth_and_fg(gt_boxes2d, gt_center_depth, num_gt_per_img,
                        B, H, W, downsample_factor):
    # TODO(synk): host-side Python loop over per-image boxes (static counts);
    # traced counts under jit would need a different (scan/segment) formulation.
    def to_int(boxes):
        b12 = jnp.floor(boxes[:, :2])
        b34 = jnp.ceil(boxes[:, 2:])
        return jnp.concatenate([b12, b34], axis=1).astype(jnp.int32)

    boxes_depth = to_int(gt_boxes2d)
    if downsample_factor != 1:
        boxes_fg = to_int(gt_boxes2d / float(downsample_factor))
    else:
        boxes_fg = boxes_depth

    rows = jnp.arange(H, dtype=jnp.int32)[:, None]   # (H, 1)
    cols = jnp.arange(W, dtype=jnp.int32)[None, :]   # (1, W)

    def box_mask(b):
        u1, v1, u2, v2 = b[0], b[1], b[2], b[3]
        return (rows >= v1) & (rows < v2) & (cols >= u1) & (cols < u2)

    dm_list, fg_list = [], []
    start = 0
    for b in range(B):
        n = int(num_gt_per_img[b])
        bx_d = boxes_depth[start:start + n]
        bx_f = boxes_fg[start:start + n]
        dps = gt_center_depth[start:start + n]
        start += n

        dm = jnp.zeros((H, W), jnp.float32)
        fg = jnp.zeros((H, W), jnp.bool_)

        # paint boxes sorted by depth descending (closer boxes overwrite)
        order = jnp.argsort(-dps)
        bx_s = bx_d[order]
        dps_s = dps[order]
        for i in range(n):
            dm = jnp.where(box_mask(bx_s[i]), dps_s[i], dm)

        # foreground mask = union of boxes (order independent)
        for i in range(n):
            fg = fg | box_mask(bx_f[i])

        dm_list.append(dm)
        fg_list.append(fg)

    depth_maps = jnp.stack(dm_list, axis=0)           # (B, H, W) f32
    fg_mask = jnp.stack(fg_list, axis=0)              # (B, H, W) bool
    return depth_maps, fg_mask


# ---------------------------------------------------------------------------
# Wrapper: DDNLoss.forward
# ---------------------------------------------------------------------------
def ddn_loss(depth_logits, gt_boxes2d, num_gt_per_img, gt_center_depth,
             *, alpha=0.25, gamma=2.0, fg_weight=13.0, bg_weight=1.0,
             downsample_factor=1,
             depth_min=0.001, depth_max=60.0, num_bins=80,
             max_tile=2048):
    # depth_logits: (B, D+1, H, W), NCHW as in PyTorch (f32 or bf16).
    B, C, H, W = depth_logits.shape
    assert C == num_bins + 1
    HW = H * W

    depth_maps, fg_mask = _build_depth_and_fg(
        gt_boxes2d, gt_center_depth, num_gt_per_img, B, H, W, downsample_factor)

    # bin_depths (mode='LID', target=True) precomputed in XLA glue.
    bin_size = 2.0 * (depth_max - depth_min) / (num_bins * (1.0 + num_bins))
    idx_f = -0.5 + 0.5 * jnp.sqrt(1.0 + 8.0 * (depth_maps - depth_min) / bin_size)
    bad = (idx_f < 0.0) | (idx_f > num_bins) | (~jnp.isfinite(idx_f))
    tgt_f = jnp.where(bad, jnp.float32(num_bins), idx_f).astype(
        jnp.int32).astype(jnp.float32)                           # (B, H, W)

    # Fold focal-loss (-alpha) and the fg/bg balance weights into one per-pixel
    # scale each (pad-free, sign carried here so the kernel never negates).
    fg = fg_mask.astype(jnp.float32)
    wfg = (-float(alpha) * float(fg_weight)) * fg
    wbg = (-float(alpha) * float(bg_weight)) * (1.0 - fg)
    aux = jnp.stack([tgt_f, wfg, wbg], axis=1).reshape(B, 3, HW)  # (B, 3, HW) f32

    # Logits streamed in their native dtype; reshape is a view, no HBM copy.
    logits = depth_logits.reshape(B, C, HW)

    max_tile = max(128, (int(max_tile) // 128) * 128)
    TILE = min(max_tile, _round_up(HW, 128))         # lane-dense 128-multiple
    n_tiles = _cdiv(HW, TILE)
    ragged = (HW % TILE) != 0                         # last tile masked in-kernel

    # Extra "parallel" axis so both v7x TensorCores stay busy when B is 1/odd.
    P = 2 if (n_tiles >= 2 and n_tiles % 2 == 0) else 1
    tpc = n_tiles // P                                # tiles per parallel chunk

    kernel = functools.partial(_ddn_loss_kernel, gamma=float(gamma),
                               hw=HW, tile=TILE, ragged=ragged)

    # Only raise the scoped-VMEM limit if tiles are grown past the safe default.
    vmem_limit = 48 * 1024 * 1024 if TILE > 2048 else None

    out = pl.pallas_call(
        kernel,
        out_shape=jax.ShapeDtypeStruct((P, B, 2, TILE), jnp.float32),
        grid_spec=pltpu.PrefetchScalarGridSpec(
            num_scalar_prefetch=0,
            grid=(P, B, tpc),
            in_specs=[
                pl.BlockSpec((None, C, TILE), lambda p, b, t: (b, 0, p * tpc + t)),
                pl.BlockSpec((None, 3, TILE), lambda p, b, t: (b, 0, p * tpc + t)),
            ],
            out_specs=pl.BlockSpec((None, None, 2, TILE),
                                   lambda p, b, t: (p, b, 0, 0)),
        ),
        compiler_params=pltpu.CompilerParams(
            dimension_semantics=("parallel", "parallel", "arbitrary"),
            vmem_limit_bytes=vmem_limit),
    )(logits, aux)

    num_pixels = jnp.float32(B * H * W)  # fg_mask.sum() + bg_mask.sum()
    fg_loss = jnp.sum(out[:, :, 0, :]) / num_pixels
    bg_loss = jnp.sum(out[:, :, 1, :]) / num_pixels
    return fg_loss + bg_loss


# ---------------------------------------------------------------------------
if __name__ == "__main__":
    key = jax.random.PRNGKey(0)
    k1, k2, k3, k4 = jax.random.split(key, 4)

    B, H, W = 2, 16, 16
    num_bins = 80
    C = num_bins + 1            # D+1 depth-logit channels
    num_gt_per_img = [3, 2]     # boxes per image (sum = 5)
    Ntot = sum(num_gt_per_img)

    # predicted depth logits (B, D+1, H, W)
    depth_logits = jax.random.normal(k1, (B, C, H, W), dtype=jnp.float32)

    # ground-truth 2D boxes (u1, v1, u2, v2) within the HxW feature map
    xy1 = jax.random.uniform(k2, (Ntot, 2), minval=0.0, maxval=10.0)
    wh = jax.random.uniform(k3, (Ntot, 2), minval=2.0, maxval=6.0)
    gt_boxes2d = jnp.clip(jnp.concatenate([xy1, xy1 + wh], axis=1), 0.0, 16.0)
    gt_boxes2d = gt_boxes2d.astype(jnp.float32)

    # ground-truth 3D-center depths per box
    gt_center_depth = jax.random.uniform(
        k4, (Ntot,), minval=1.0, maxval=55.0).astype(jnp.float32)

    loss = ddn_loss(depth_logits, gt_boxes2d, num_gt_per_img, gt_center_depth)
    loss = jax.block_until_ready(loss)
    assert loss.shape == () and jnp.isfinite(loss)
    print("KERNEL_OK")
</pallas_src>

<mosaic_0001>
module attributes {stable_mosaic.version = 11 : i64} {
  func.func @_ddn_loss_kernel(%arg0: i32, %arg1: i32, %arg2: i32, %arg3: memref<1x81x256xf32, #tpu.memory_space<vmem>>, %arg4: memref<1x3x256xf32, #tpu.memory_space<vmem>>, %arg5: memref<1x1x2x256xf32, #tpu.memory_space<vmem>>) attributes {dimension_semantics = [#tpu.dimension_semantics<parallel>, #tpu.dimension_semantics<parallel>, #tpu.dimension_semantics<arbitrary>], iteration_bounds = array<i64: 1, 2, 1>, scalar_prefetch = 0 : i64, scratch_operands = 0 : i64, tpu.core_type = #tpu.core_type<tc>, window_params = [{transform_indices = @transform_0, window_bounds = array<i64: 1, 81, 256>}, {transform_indices = @transform_1, window_bounds = array<i64: 1, 3, 256>}, {transform_indices = @transform_2, window_bounds = array<i64: 1, 1, 2, 256>}]} {
    %c0_i32 = arith.constant 0 : i32
    %0 = arith.cmpi eq, %arg2, %c0_i32 : i32
    %1 = arith.extui %0 : i1 to i32
    %c0_i32_0 = arith.constant 0 : i32
    %2 = arith.cmpi ne, %1, %c0_i32_0 : i32
    scf.if %2 {
      %cst_21 = arith.constant 0.000000e+00 : f32
      %49 = vector.broadcast %cst_21 : f32 to vector<2x256xf32>
      %c0_22 = arith.constant 0 : index
      %c0_23 = arith.constant 0 : index
      %c0_24 = arith.constant 0 : index
      %c0_25 = arith.constant 0 : index
      %50 = vector.load %arg5[%c0_22, %c0_23, %c0_24, %c0_25] : memref<1x1x2x256xf32, #tpu.memory_space<vmem>>, vector<1x1x2x256xf32>
      %51 = vector.shape_cast %50 : vector<1x1x2x256xf32> to vector<2x256xf32>
      %52 = vector.shape_cast %49 : vector<2x256xf32> to vector<1x1x2x256xf32>
      tpu.vector_store %arg5[%c0_22, %c0_23, %c0_24, %c0_25], %52 {strides = array<i32>} : memref<1x1x2x256xf32, #tpu.memory_space<vmem>>, vector<1x1x2x256xf32>,
    } else {
    }
    %c0 = arith.constant 0 : index
    %c0_1 = arith.constant 0 : index
    %c0_2 = arith.constant 0 : index
    %3 = vector.load %arg3[%c0, %c0_1, %c0_2] : memref<1x81x256xf32, #tpu.memory_space<vmem>>, vector<1x81x256xf32>
    %4 = vector.shape_cast %3 : vector<1x81x256xf32> to vector<81x256xf32>
    %c0_3 = arith.constant 0 : index
    %c0_4 = arith.constant 0 : index
    %c0_5 = arith.constant 0 : index
    %5 = vector.load %arg4[%c0_3, %c0_4, %c0_5] : memref<1x3x256xf32, #tpu.memory_space<vmem>>, vector<1x3x256xf32>
    %6 = vector.shape_cast %5 : vector<1x3x256xf32> to vector<3x256xf32>
    %7 = vector.extract_strided_slice %6 {offsets = [0, 0], sizes = [1, 256], strides = [1, 1]} : vector<3x256xf32> to vector<1x256xf32>
    %8 = arith.fptosi %7 : vector<1x256xf32> to vector<1x256xi32>
    %cst = arith.constant dense<0xFF800000> : vector<256xf32>
    %9 = vector.multi_reduction <maximumf>, %4, %cst [0] : vector<81x256xf32> to vector<256xf32>
    %10 = vector.shape_cast %9 : vector<256xf32> to vector<1x256xf32>
    %11 = vector.broadcast %10 : vector<1x256xf32> to vector<81x256xf32>
    %12 = arith.subf %4, %11 : vector<81x256xf32>
    %13 = math.exp %12 : vector<81x256xf32>
    %cst_6 = arith.constant dense<0.000000e+00> : vector<256xf32>
    %14 = vector.multi_reduction <add>, %13, %cst_6 [0] : vector<81x256xf32> to vector<256xf32>
    %15 = vector.shape_cast %14 : vector<256xf32> to vector<1x256xf32>
    %16 = tpu.reciprocal %15 {approx = true} : vector<1x256xf32> -> vector<1x256xf32>
    %17 = math.log %15 : vector<1x256xf32>
    %18 = vector.broadcast %16 : vector<1x256xf32> to vector<81x256xf32>
    %19 = arith.mulf %13, %18 : vector<81x256xf32>
    %20 = vector.broadcast %17 : vector<1x256xf32> to vector<81x256xf32>
    %21 = arith.subf %12, %20 : vector<81x256xf32>
    %cst_7 = arith.constant -18.420681 : f32
    %22 = vector.broadcast %cst_7 : f32 to vector<81x256xf32>
    %23 = arith.maximumf %21, %22 : vector<81x256xf32>
    %cst_8 = arith.constant 1.000000e+00 : f32
    %24 = vector.broadcast %cst_8 : f32 to vector<81x256xf32>
    %25 = arith.subf %24, %19 : vector<81x256xf32>
    %26 = arith.mulf %25, %25 : vector<81x256xf32>
    %27 = arith.mulf %26, %23 : vector<81x256xf32>
    %28 = tpu.iota {dimensions = array<i32: 0>} : vector<81x256xi32>
    %29 = vector.broadcast %8 : vector<1x256xi32> to vector<81x256xi32>
    %30 = arith.cmpi eq, %28, %29 : vector<81x256xi32>
    %cst_9 = arith.constant 0.000000e+00 : f32
    %31 = vector.broadcast %cst_9 : f32 to vector<81x256xf32>
    %32 = arith.select %30, %27, %31 : vector<81x256xi1>, vector<81x256xf32>
    %cst_10 = arith.constant dense<0.000000e+00> : vector<256xf32>
    %33 = vector.multi_reduction <add>, %32, %cst_10 [0] : vector<81x256xf32> to vector<256xf32>
    %34 = vector.shape_cast %33 : vector<256xf32> to vector<1x256xf32>
    %cst_11 = arith.constant dense<0.000000e+00> : vector<256xf32>
    %35 = vector.multi_reduction <add>, %27, %cst_11 [0] : vector<81x256xf32> to vector<256xf32>
    %36 = vector.shape_cast %35 : vector<256xf32> to vector<1x256xf32>
    %cst_12 = arith.constant 9.99999997E-7 : f32
    %37 = vector.broadcast %cst_12 : f32 to vector<1x256xf32>
    %38 = arith.mulf %37, %36 : vector<1x256xf32>
    %39 = arith.addf %34, %38 : vector<1x256xf32>
    %40 = vector.extract_strided_slice %6 {offsets = [1, 0], sizes = [2, 256], strides = [1, 1]} : vector<3x256xf32> to vector<2x256xf32>
    %41 = vector.broadcast %39 : vector<1x256xf32> to vector<2x256xf32>
    %42 = arith.mulf %41, %40 : vector<2x256xf32>
    %c0_13 = arith.constant 0 : index
    %c0_14 = arith.constant 0 : index
    %c0_15 = arith.constant 0 : index
    %c0_16 = arith.constant 0 : index
    %43 = vector.load %arg5[%c0_13, %c0_14, %c0_15, %c0_16] : memref<1x1x2x256xf32, #tpu.memory_space<vmem>>, vector<1x1x2x256xf32>
    %44 = vector.shape_cast %43 : vector<1x1x2x256xf32> to vector<2x256xf32>
    %45 = arith.addf %44, %42 : vector<2x256xf32>
    %c0_17 = arith.constant 0 : index
    %c0_18 = arith.constant 0 : index
    %c0_19 = arith.constant 0 : index
    %c0_20 = arith.constant 0 : index
    %46 = vector.load %arg5[%c0_17, %c0_18, %c0_19, %c0_20] : memref<1x1x2x256xf32, #tpu.memory_space<vmem>>, vector<1x1x2x256xf32>
    %47 = vector.shape_cast %46 : vector<1x1x2x256xf32> to vector<2x256xf32>
    %48 = vector.shape_cast %45 : vector<2x256xf32> to vector<1x1x2x256xf32>
    tpu.vector_store %arg5[%c0_17, %c0_18, %c0_19, %c0_20], %48 {strides = array<i32>} : memref<1x1x2x256xf32, #tpu.memory_space<vmem>>, vector<1x1x2x256xf32>,
    return
  }
  func.func @transform_0(%arg0: i32, %arg1: i32, %arg2: i32) -> (i32, i32, i32) {
    %c1_i32 = arith.constant 1 : i32
    %0 = arith.muli %arg0, %c1_i32 : i32
    %1 = arith.addi %0, %arg2 : i32
    %c0_i32 = arith.constant 0 : i32
    %c0_i32_0 = arith.constant 0 : i32
    return %arg1, %c0_i32, %1 : i32, i32, i32
  }
  func.func @transform_1(%arg0: i32, %arg1: i32, %arg2: i32) -> (i32, i32, i32) {
    %c1_i32 = arith.constant 1 : i32
    %0 = arith.muli %arg0, %c1_i32 : i32
    %1 = arith.addi %0, %arg2 : i32
    %c0_i32 = arith.constant 0 : i32
    %c0_i32_0 = arith.constant 0 : i32
    return %arg1, %c0_i32, %1 : i32, i32, i32
  }
  func.func @transform_2(%arg0: i32, %arg1: i32, %arg2: i32) -> (i32, i32, i32, i32) {
    %c0_i32 = arith.constant 0 : i32
    %c0_i32_0 = arith.constant 0 : i32
    %c0_i32_1 = arith.constant 0 : i32
    return %arg0, %arg1, %c0_i32, %c0_i32_0 : i32, i32, i32, i32
  }
}

</mosaic_0001>

<llo_original>
// kernel: tpu_custom_call.1
$region0: #{tpu_custom_call.1}
  #allocation0 [shape = 'u32[]', space=smem, size = 0x4, offset = 0x4, fixed_abs, tag = 'smem constant byte address 0x4 - core index']
  #allocation1 [shape = 'u32[72,128]{1,0:T(1,128)}', space=vmem, size = 0x9000, scoped, tag = 'internal scratch']
  %s0 = inlined_call_operand.vmem [shape: f32[2,81,256], index: 0, kind: input, shape index: {}]
  %s1 = inlined_call_operand.vmem [shape: f32[2,3,256], index: 1, kind: input, shape index: {}]
  %s2 = inlined_call_operand.hbm [shape: f32[1,2,2,256], index: 2, kind: output, shape index: {}]
  %s3 = sld [smem:[#allocation0]]
  $region45: #{tpu_custom_call.1} parent=0
    _
  %s5 = ssub.s32 1, %s3
  %s6 = scalar_select 0, %s5, %s3
  $region1: #{tpu_custom_call.1} parent=0
    #allocation2 [shape = 'u8[4096]{0}', space=vmem, size = 0x1000, scoped, tag = 'output window, operand 0']
    #allocation3 [shape = 's32[2]{0}', space=sflag, size = 0x8, scoped, tag = 'scoped memory for tpu_custom_call.1']
    %7 = vsyncpa [#allocation3], 0
    %s8 = scalar_lea.sflag [#allocation3], 1
    %9 = vsyncpa %s8, 0
    loop: start=0, step=1, limit=4
    $region2: #{tpu_custom_call.1} parent=1 // loop_pre_header
      _
    $region3: #{tpu_custom_call.1} parent=1 // loop_header
      %s11 = sphi 0, %s15
      %p12 = scmp.ge.s32.totalorder %s11, 4
      %s18 = sphi 0, %s37
      %s19 = sphi 0, %s33
      %s20 = sphi 0, %s29
      %s21 = sphi 0, %s18
      %s22 = sphi 0, %s19
      %s23 = sphi 0, %s20
      %s24 = sphi 0, %s21
      %s25 = sphi 0, %s22
      %s26 = sphi 0, %s23
      %s44 = sphi 0, %s46
      %s47 = sphi 0, %s44
      %s48 = sphi 0, %s47
      %s64 = sphi 0, %s48
      %s74 = sphi 0, %s76
      %s77 = sphi 0, %s74
      %s78 = sphi 0, %s77
      %s94 = sphi 0, %s78
      %s102 = sphi 0, %s104
      %s105 = sphi 0, %s102
      %s106 = sphi 0, %s105
      %s122 = sphi 0, %s106
    $region4: #{tpu_custom_call.1} parent=1 // loop_header_branch
      %14 = sbr.rel (%p12) target = $region8
    $region5: #{tpu_custom_call.1} parent=1 // loop_body
      %s16 = ssub.s32 %s11, 1
      %s17 = ssub.s32 %s11, 2
      %s27 = sadd.s32 1, %s20
      %p28 = scmp.ge.s32.totalorder %s27, 1
      %s29 = scalar_select %p28, 0, %s27
      %s30 = sadd.s32 1, %s19
      %s31 = scalar_select %p28, %s30, %s19
      %p32 = scmp.ge.s32.totalorder %s31, 2
      %s33 = scalar_select %p32, 0, %s31
      %s34 = sadd.s32 1, %s18
      %s35 = scalar_select %p32, %s34, %s18
      %p36 = scmp.ge.s32.totalorder %s35, 1
      %s37 = scalar_select %p36, 0, %s35
      %s38 = sadd.s32 %s18, %s20
      %s39 = sadd.s32 %s37, %s29
      %s40 = ssub.s32 %s19, %s33
      %s41 = ssub.s32 %s38, %s39
      %s42 = sor.u32 %s40, %s41
      %p43 = scmp.eq.s32.totalorder %s42, 0
      %s45 = sadd.s32 %s44, 1
      %s46 = scalar_select %p43, %s44, %s45
      %p49 = pneg %p43
      %p50 = scmp.eq.s32.totalorder %s11, 1
      %p51 = por %p49, %p50
      %p52 = scmp.ne.s32.totalorder %s44, %s47
      %p53 = scmp.eq.s32.totalorder %s11, 0
      %p54 = por %p52, %p53
      %p55 = scmp.ne.s32.totalorder %s44, %s47
      %p56 = scmp.eq.s32.totalorder %s16, 1
      %p57 = por %p55, %p56
      %p58 = scmp.ne.s32.totalorder %s47, %s48
      %p59 = scmp.eq.s32.totalorder %s16, 0
      %p60 = por %p58, %p59
      %p61 = scmp.ne.s32.totalorder %s47, %s48
      %p62 = scmp.eq.s32.totalorder %s17, 1
      %p63 = por %p61, %p62
      %p65 = scmp.ne.s32.totalorder %s48, %s64
      %p66 = scmp.eq.s32.totalorder %s17, 0
      %p67 = por %p65, %p66
      %s68 = sadd.s32 %s18, %s20
      %s69 = sadd.s32 %s37, %s29
      %s70 = ssub.s32 %s19, %s33
      %s71 = ssub.s32 %s68, %s69
      %s72 = sor.u32 %s70, %s71
      %p73 = scmp.eq.s32.totalorder %s72, 0
      %s75 = sadd.s32 %s74, 1
      %s76 = scalar_select %p73, %s74, %s75
      %p79 = pneg %p73
      %p80 = scmp.eq.s32.totalorder %s11, 1
      %p81 = por %p79, %p80
      %p82 = scmp.ne.s32.totalorder %s74, %s77
      %p83 = scmp.eq.s32.totalorder %s11, 0
      %p84 = por %p82, %p83
      %p85 = scmp.ne.s32.totalorder %s74, %s77
      %p86 = scmp.eq.s32.totalorder %s16, 1
      %p87 = por %p85, %p86
      %p88 = scmp.ne.s32.totalorder %s77, %s78
      %p89 = scmp.eq.s32.totalorder %s16, 0
      %p90 = por %p88, %p89
      %p91 = scmp.ne.s32.totalorder %s77, %s78
      %p92 = scmp.eq.s32.totalorder %s17, 1
      %p93 = por %p91, %p92
      %p95 = scmp.ne.s32.totalorder %s78, %s94
      %p96 = scmp.eq.s32.totalorder %s17, 0
      %p97 = por %p95, %p96
      %s98 = ssub.s32 %s18, %s37
      %s99 = ssub.s32 %s19, %s33
      %s100 = sor.u32 %s98, %s99
      %p101 = scmp.eq.s32.totalorder %s100, 0
      %s103 = sadd.s32 %s102, 1
      %s104 = scalar_select %p101, %s102, %s103
      %p107 = pneg %p101
      %p108 = scmp.eq.s32.totalorder %s11, 1
      %p109 = por %p107, %p108
      %p110 = scmp.ne.s32.totalorder %s102, %s105
      %p111 = scmp.eq.s32.totalorder %s11, 0
      %p112 = por %p110, %p111
      %p113 = scmp.ne.s32.totalorder %s102, %s105
      %p114 = scmp.eq.s32.totalorder %s16, 1
      %p115 = por %p113, %p114
      %p116 = scmp.ne.s32.totalorder %s105, %s106
      %p117 = scmp.eq.s32.totalorder %s16, 0
      %p118 = por %p116, %p117
      %p119 = scmp.ne.s32.totalorder %s105, %s106
      %p120 = scmp.eq.s32.totalorder %s17, 1
      %p121 = por %p119, %p120
      %p123 = scmp.ne.s32.totalorder %s106, %s122
      %p124 = scmp.eq.s32.totalorder %s17, 0
      %p125 = por %p123, %p124
      %p126 = scmp.le.s32.totalorder 1, %s11
      %p127 = scmp.lt.s32.totalorder %s11, 3
      %p128 = pnand %p126, %p127
      %p129 = pneg %p128
      // Predicated region
      $region9: #{tpu_custom_call.1} parent=5 // pred_check
        _
      $region10: #{tpu_custom_call.1} parent=5 // pred_check_branch
        %131 = sbr.rel (%p128) target = $region12
      $region11: #{tpu_custom_call.1} parent=5 // pred_region
        %s132 = ssub.s32 %s11, 1
      $region12: #{tpu_custom_call.1} parent=5 // pred_fallthru
        _
      %p133 = scmp.lt.s32.totalorder %s11, 2
      // Predicated region
      $region13: #{tpu_custom_call.1} parent=5 // pred_check
        %p134 = pneg %p133
      $region14: #{tpu_custom_call.1} parent=5 // pred_check_branch
        %136 = sbr.rel (%p134) target = $region16
      $region15: #{tpu_custom_call.1} parent=5 // pred_region
        // Predicated region
        $region17: #{tpu_custom_call.1} parent=15 // pred_check
          %p137 = pneg %p54
        $region18: #{tpu_custom_call.1} parent=15 // pred_check_branch
          %139 = sbr.rel (%p137) target = $region20
        $region19: #{tpu_custom_call.1} parent=15 // pred_region
          %s140 = sadd.s32 %s18, %s20
          %s141 = smul.u32 2, %s140
          %p142 = scmp.lt.s32.totalorder %s19, 1
          %s143 = scalar_select %p142, %s19, 1
          %p144 = scmp.lt.s32.totalorder %s141, 1
          %s145 = scalar_select %p144, %s141, 1
          %s146 = smul.addr %s143, 22
          %s147 = sadd.s32 %s145, %s146
          %s148 = smul.addr %s147, 8
          %s149 = scalar_lea.vmem %s0, %s148
          %s150 = sadd.s32 %s18, %s20
          %s151 = smul.u32 2, %s150
        $region20: #{tpu_custom_call.1} parent=15 // pred_fallthru
          _
        // Predicated region
        $region21: #{tpu_custom_call.1} parent=15 // pred_check
          %p152 = pneg %p84
        $region22: #{tpu_custom_call.1} parent=15 // pred_check_branch
          %154 = sbr.rel (%p152) target = $region24
        $region23: #{tpu_custom_call.1} parent=15 // pred_region
          %s155 = sadd.s32 %s18, %s20
          %s156 = smul.u32 2, %s155
          %p157 = scmp.lt.s32.totalorder %s19, 1
          %s158 = scalar_select %p157, %s19, 1
          %p159 = scmp.lt.s32.totalorder %s156, 1
          %s160 = scalar_select %p159, %s156, 1
          %s161 = smul.addr %s158, 2
          %s162 = sadd.s32 %s160, %s161
          %s163 = smul.addr %s162, 4
          %s164 = scalar_lea.vmem %s1, %s163
          %s165 = sadd.s32 %s18, %s20
          %s166 = smul.u32 2, %s165
        $region24: #{tpu_custom_call.1} parent=15 // pred_fallthru
          _
      $region16: #{tpu_custom_call.1} parent=5 // pred_fallthru
        _
      %p167 = scmp.le.s32.totalorder 1, %s11
      %p168 = scmp.lt.s32.totalorder %s11, 3
      %p169 = pnand %p167, %p168
      %p170 = pneg %p169
      // Predicated region
      $region25: #{tpu_custom_call.1} parent=5 // pred_check
        _
      $region26: #{tpu_custom_call.1} parent=5 // pred_check_branch
        %172 = sbr.rel (%p169) target = $region28
      $region27: #{tpu_custom_call.1} parent=5 // pred_region
        %s173 = ssub.s32 %s11, 1
        %s174 = sadd.s32 %s21, %s23
        %s175 = smul.u32 2, %s174
        %p176 = scmp.lt.s32.totalorder %s22, 1
        %s177 = scalar_select %p176, %s22, 1
        %p178 = scmp.lt.s32.totalorder %s175, 1
        %s179 = scalar_select %p178, %s175, 1
        %s180 = smul.addr %s177, 22
        %s181 = sadd.s32 %s179, %s180
        %s182 = smul.addr %s181, 8
        %s183 = scalar_lea.vmem %s0, %s182
        %p184 = pneg %p60
        %p185 = pneg %p57
        %s186 = sadd.s32 %s21, %s23
        %s187 = smul.u32 2, %s186
        %p188 = scmp.lt.s32.totalorder %s22, 1
        %s189 = scalar_select %p188, %s22, 1
        %p190 = scmp.lt.s32.totalorder %s187, 1
        %s191 = scalar_select %p190, %s187, 1
        %s192 = smul.addr %s189, 2
        %s193 = sadd.s32 %s191, %s192
        %s194 = smul.addr %s193, 4
        %s195 = scalar_lea.vmem %s1, %s194
        %p196 = pneg %p90
        %p197 = pneg %p87
        %p198 = pneg %p118
        %p199 = pneg %p115
        %s200 = sand.u32 %s105, 1
        %s201 = scalar_lea.sflag [#allocation3], %s200
        %s202 = sand.u32 %s105, 1
        %s203 = smul.addr %s202, 4
        %s204 = scalar_lea.vmem [#allocation2], %s203
        %s205 = sadd.s32 %s21, %s23
        %s206 = smul.u32 2, %s205
        %p207 = scmp.lt.s32.totalorder %s22, 1
        %s208 = scalar_select %p207, %s22, 1
        %p209 = scmp.lt.s32.totalorder %s206, 1
        %s210 = scalar_select %p209, %s206, 1
        %s211 = smul.addr %s208, 22
        %s212 = sadd.s32 %s210, %s211
        %s213 = smul.addr %s212, 8
        %s214 = scalar_lea.vmem %s0, %s213
        %s215 = sadd.s32 %s21, %s23
        %s216 = smul.u32 2, %s215
        %s217 = sadd.s32 %s21, %s23
        %s218 = smul.u32 2, %s217
        %p219 = scmp.lt.s32.totalorder %s22, 1
        %s220 = scalar_select %p219, %s22, 1
        %p221 = scmp.lt.s32.totalorder %s218, 1
        %s222 = scalar_select %p221, %s218, 1
        %s223 = smul.addr %s220, 2
        %s224 = sadd.s32 %s222, %s223
        %s225 = smul.addr %s224, 4
        %s226 = scalar_lea.vmem %s1, %s225
        %s227 = sadd.s32 %s21, %s23
        %s228 = smul.u32 2, %s227
        %p229 = scmp.eq.s32.totalorder %s23, 0
        // Predicated region
        $region29: #{tpu_custom_call.1} parent=27 // pred_check
          %p230 = pneg %p229
        $region30: #{tpu_custom_call.1} parent=27 // pred_check_branch
          %232 = sbr.rel (%p230) target = $region32
        $region31: #{tpu_custom_call.1} parent=27 // pred_region
          %233 = vst [vmem:[%s204] sm:$0xf] 0.0
        $region32: #{tpu_custom_call.1} parent=27 // pred_fallthru
          _
        %v234 = vld [vmem:[%s214] sm:$0xff]
        %v235 = vld [vmem:[%s214 + $0x8] sm:$0xff]
        %v236 = vld [vmem:[%s214 + $0x10] sm:$0xff]
        %v237 = vld [vmem:[%s214 + $0x18] sm:$0xff]
        %v238 = vld [vmem:[%s214 + $0x20] sm:$0xff]
        %v239 = vld [vmem:[%s214 + $0x28] sm:$0xff]
        %v240 = vld [vmem:[%s214 + $0x30] sm:$0xff]
        %v241 = vld [vmem:[%s214 + $0x38] sm:$0xff]
        %v242 = vld [vmem:[%s214 + $0x40] sm:$0xff]
        %v243 = vld [vmem:[%s214 + $0x48] sm:$0xff]
        %v244 = vld [vmem:[%s214 + $0x50] sm:$0xff]
        %v245 = vld [vmem:[%s214 + $0x58] sm:$0xff]
        %v246 = vld [vmem:[%s214 + $0x60] sm:$0xff]
        %v247 = vld [vmem:[%s214 + $0x68] sm:$0xff]
        %v248 = vld [vmem:[%s214 + $0x70] sm:$0xff]
        %v249 = vld [vmem:[%s214 + $0x78] sm:$0xff]
        %v250 = vld [vmem:[%s214 + $0x80] sm:$0xff]
        %v251 = vld [vmem:[%s214 + $0x88] sm:$0xff]
        %v252 = vld [vmem:[%s214 + $0x90] sm:$0xff]
        %v253 = vld [vmem:[%s214 + $0x98] sm:$0xff]
        %v254 = vld [vmem:[%s214 + $0xa0] sm:$0x1]
        %v255 = vld [vmem:[%s214 + $0xa8] sm:$0x1]
        %v256 = vld [vmem:[%s226] sm:$0x77]
        %v257 = vcvt.f32.s32.to.zero.pseudo %v256
        %v258 = vmax.f32 %v234, %v238
        %v259 = vmax.f32 %v236, %v240
        %v260 = vmax.f32 %v258, %v242
        %v261 = vmax.f32 %v259, %v244
        %v262 = vmax.f32 %v260, %v246
        %v263 = vmax.f32 %v261, %v248
        %v264 = vmax.f32 %v262, %v250
        %v265 = vmax.f32 %v263, %v252
        %vm266 = vcmask 1040384
        %v267 = vsel %vm266, %v254, -inf
        %v268 = vmax.f32 %v264, %v267
        %v269 = vmax.f32 %v268, %v265
        %v270 = vrot.slane %v269, 4
        %v271 = vmax.f32 %v269, %v270
        %v272 = vrot.slane %v271, 2
        %v273 = vmax.f32 %v271, %v272
        %v274 = vrot.slane %v273, 1
        %v275 = vmax.f32 %v273, %v274
        %v276 = vmax.f32 %v235, %v239
        %v277 = vmax.f32 %v237, %v241
        %v278 = vmax.f32 %v276, %v243
        %v279 = vmax.f32 %v277, %v245
        %v280 = vmax.f32 %v278, %v247
        %v281 = vmax.f32 %v279, %v249
        %v282 = vmax.f32 %v280, %v251
        %v283 = vmax.f32 %v281, %v253
        %v284 = vsel %vm266, %v255, -inf
        %v285 = vmax.f32 %v282, %v284
        %v286 = vmax.f32 %v285, %v283
        %v287 = vrot.slane %v286, 4
        %v288 = vmax.f32 %v286, %v287
        %v289 = vrot.slane %v288, 2
        %v290 = vmax.f32 %v288, %v289
        %v291 = vrot.slane %v290, 1
        %v292 = vmax.f32 %v290, %v291
        %v293 = vsub.f32 %v234, %v275
        %v294 = vsub.f32 %v235, %v292
        %v295 = vsub.f32 %v236, %v275
        %v296 = vsub.f32 %v237, %v292
        %v297 = vsub.f32 %v238, %v275
        %v298 = vsub.f32 %v239, %v292
        %v299 = vsub.f32 %v240, %v275
        %v300 = vsub.f32 %v241, %v292
        %v301 = vsub.f32 %v242, %v275
        %v302 = vsub.f32 %v243, %v292
        %v303 = vsub.f32 %v244, %v275
        %v304 = vsub.f32 %v245, %v292
        %v305 = vsub.f32 %v246, %v275
        %v306 = vsub.f32 %v247, %v292
        %v307 = vsub.f32 %v248, %v275
        %v308 = vsub.f32 %v249, %v292
        %v309 = vsub.f32 %v250, %v275
        %v310 = vsub.f32 %v251, %v292
        %v311 = vsub.f32 %v252, %v275
        %v312 = vsub.f32 %v253, %v292
        %v313 = vsub.f32 %v254, %v275
        %v314 = vsub.f32 %v255, %v292
        %v315 = vmul.f32 %v293, 1.442695
        %v316 = vpow.pop %v315
        %v317 = vmul.f32 %v294, 1.442695
        %v318 = vpow.pop %v317
        %v319 = vmul.f32 %v295, 1.442695
        %v320 = vpow.pop %v319
        %v321 = vmul.f32 %v296, 1.442695
        %v322 = vpow.pop %v321
        %v323 = vmul.f32 %v297, 1.442695
        %v324 = vpow.pop %v323
        %v325 = vmul.f32 %v298, 1.442695
        %v326 = vpow.pop %v325
        %v327 = vmul.f32 %v299, 1.442695
        %v328 = vpow.pop %v327
        %v329 = vmul.f32 %v300, 1.442695
        %v330 = vpow.pop %v329
        %v331 = vmul.f32 %v301, 1.442695
        %v332 = vpow.pop %v331
        %v333 = vmul.f32 %v302, 1.442695
        %v334 = vpow.pop %v333
        %v335 = vmul.f32 %v303, 1.442695
        %v336 = vpow.pop %v335
        %v337 = vmul.f32 %v304, 1.442695
        %v338 = vpow.pop %v337
        %v339 = vmul.f32 %v305, 1.442695
        %v340 = vpow.pop %v339
        %v341 = vmul.f32 %v306, 1.442695
        %v342 = vpow.pop %v341
        %v343 = vmul.f32 %v307, 1.442695
        %v344 = vpow.pop %v343
        %v345 = vmul.f32 %v308, 1.442695
        %v346 = vpow.pop %v345
        %v347 = vmul.f32 %v309, 1.442695
        %v348 = vpow.pop %v347
        %v349 = vmul.f32 %v310, 1.442695
        %v350 = vpow.pop %v349
        %v351 = vmul.f32 %v311, 1.442695
        %v352 = vpow.pop %v351
        %v353 = vmul.f32 %v312, 1.442695
        %v354 = vpow.pop %v353
        %v355 = vmul.f32 %v313, 1.442695
        %v356 = vpow.pop %v355
        %v357 = vmul.f32 %v314, 1.442695
        %v358 = vpow.pop %v357
        %v359 = vadd.f32 %v316, %v320
        %v360 = vadd.f32 %v359, %v324
        %v361 = vadd.f32 %v360, %v328
        %v362 = vadd.f32 %v361, %v332
        %v363 = vadd.f32 %v362, %v336
        %v364 = vadd.f32 %v363, %v340
        %v365 = vadd.f32 %v364, %v344
        %v366 = vadd.f32 %v365, %v348
        %v367 = vadd.f32 %v366, %v352
        %v368 = vsel %vm266, %v356, 0.0
        %v369 = vadd.f32 %v367, %v368
        %v370 = vrot.slane %v369, 4
        %v371 = vadd.f32 %v369, %v370
        %v372 = vrot.slane %v371, 2
        %v373 = vadd.f32 %v371, %v372
        %v374 = vrot.slane %v373, 1
        %v375 = vadd.f32 %v373, %v374
        %v376 = vadd.f32 %v318, %v322
        %v377 = vadd.f32 %v376, %v326
        %v378 = vadd.f32 %v377, %v330
        %v379 = vadd.f32 %v378, %v334
        %v380 = vadd.f32 %v379, %v338
        %v381 = vadd.f32 %v380, %v342
        %v382 = vadd.f32 %v381, %v346
        %v383 = vadd.f32 %v382, %v350
        %v384 = vadd.f32 %v383, %v354
        %v385 = vsel %vm266, %v358, 0.0
        %v386 = vadd.f32 %v384, %v385
        %v387 = vrot.slane %v386, 4
        %v388 = vadd.f32 %v386, %v387
        %v389 = vrot.slane %v388, 2
        %v390 = vadd.f32 %v388, %v389
        %v391 = vrot.slane %v390, 1
        %v392 = vadd.f32 %v390, %v391
        %v393 = vrcp.pop %v375
        %v394 = vrcp.pop %v392
        %v395 = vlog2.pop %v375
        %v396 = vmul.f32 %v395, 0.6931472
        %v397 = vlog2.pop %v392
        %v398 = vmul.f32 %v397, 0.6931472
        %v399 = vmul.f32 %v316, %v393
        %v400 = vmul.f32 %v318, %v394
        %v401 = vmul.f32 %v320, %v393
        %v402 = vmul.f32 %v322, %v394
        %v403 = vmul.f32 %v324, %v393
        %v404 = vmul.f32 %v326, %v394
        %v405 = vmul.f32 %v328, %v393
        %v406 = vmul.f32 %v330, %v394
        %v407 = vmul.f32 %v332, %v393
        %v408 = vmul.f32 %v334, %v394
        %v409 = vmul.f32 %v336, %v393
        %v410 = vmul.f32 %v338, %v394
        %v411 = vmul.f32 %v340, %v393
        %v412 = vmul.f32 %v342, %v394
        %v413 = vmul.f32 %v344, %v393
        %v414 = vmul.f32 %v346, %v394
        %v415 = vmul.f32 %v348, %v393
        %v416 = vmul.f32 %v350, %v394
        %v417 = vmul.f32 %v352, %v393
        %v418 = vmul.f32 %v354, %v394
        %v419 = vmul.f32 %v356, %v393
        %v420 = vmul.f32 %v358, %v394
        %v421 = vsub.f32 %v293, %v396
        %v422 = vsub.f32 %v294, %v398
        %v423 = vsub.f32 %v295, %v396
        %v424 = vsub.f32 %v296, %v398
        %v425 = vsub.f32 %v297, %v396
        %v426 = vsub.f32 %v298, %v398
        %v427 = vsub.f32 %v299, %v396
        %v428 = vsub.f32 %v300, %v398
        %v429 = vsub.f32 %v301, %v396
        %v430 = vsub.f32 %v302, %v398
        %v431 = vsub.f32 %v303, %v396
        %v432 = vsub.f32 %v304, %v398
        %v433 = vsub.f32 %v305, %v396
        %v434 = vsub.f32 %v306, %v398
        %v435 = vsub.f32 %v307, %v396
        %v436 = vsub.f32 %v308, %v398
        %v437 = vsub.f32 %v309, %v396
        %v438 = vsub.f32 %v310, %v398
        %v439 = vsub.f32 %v311, %v396
        %v440 = vsub.f32 %v312, %v398
        %v441 = vsub.f32 %v313, %v396
        %v442 = vsub.f32 %v314, %v398
        %v443 = vmax.f32 %v421, -18.420681
        %v444 = vmax.f32 %v422, -18.420681
        %v445 = vmax.f32 %v423, -18.420681
        %v446 = vmax.f32 %v424, -18.420681
        %v447 = vmax.f32 %v425, -18.420681
        %v448 = vmax.f32 %v426, -18.420681
        %v449 = vmax.f32 %v427, -18.420681
        %v450 = vmax.f32 %v428, -18.420681
        %v451 = vmax.f32 %v429, -18.420681
        %v452 = vmax.f32 %v430, -18.420681
        %v453 = vmax.f32 %v431, -18.420681
        %v454 = vmax.f32 %v432, -18.420681
        %v455 = vmax.f32 %v433, -18.420681
        %v456 = vmax.f32 %v434, -18.420681
        %v457 = vmax.f32 %v435, -18.420681
        %v458 = vmax.f32 %v436, -18.420681
        %v459 = vmax.f32 %v437, -18.420681
        %v460 = vmax.f32 %v438, -18.420681
        %v461 = vmax.f32 %v439, -18.420681
        %v462 = vmax.f32 %v440, -18.420681
        %v463 = vmax.f32 %v441, -18.420681
        %v464 = vmax.f32 %v442, -18.420681
        %v465 = vsub.f32 1.0, %v399
        %v466 = vsub.f32 1.0, %v400
        %v467 = vsub.f32 1.0, %v401
        %v468 = vsub.f32 1.0, %v402
        %v469 = vsub.f32 1.0, %v403
        %v470 = vsub.f32 1.0, %v404
        %v471 = vsub.f32 1.0, %v405
        %v472 = vsub.f32 1.0, %v406
        %v473 = vsub.f32 1.0, %v407
        %v474 = vsub.f32 1.0, %v408
        %v475 = vsub.f32 1.0, %v409
        %v476 = vsub.f32 1.0, %v410
        %v477 = vsub.f32 1.0, %v411
        %v478 = vsub.f32 1.0, %v412
        %v479 = vsub.f32 1.0, %v413
        %v480 = vsub.f32 1.0, %v414
        %v481 = vsub.f32 1.0, %v415
        %v482 = vsub.f32 1.0, %v416
        %v483 = vsub.f32 1.0, %v417
        %v484 = vsub.f32 1.0, %v418
        %v485 = vsub.f32 1.0, %v419
        %v486 = vsub.f32 1.0, %v420
        %v487 = vmul.f32 %v465, %v465
        %v488 = vmul.f32 %v466, %v466
        %v489 = vmul.f32 %v467, %v467
        %v490 = vmul.f32 %v468, %v468
        %v491 = vmul.f32 %v469, %v469
        %v492 = vmul.f32 %v470, %v470
        %v493 = vmul.f32 %v471, %v471
        %v494 = vmul.f32 %v472, %v472
        %v495 = vmul.f32 %v473, %v473
        %v496 = vmul.f32 %v474, %v474
        %v497 = vmul.f32 %v475, %v475
        %v498 = vmul.f32 %v476, %v476
        %v499 = vmul.f32 %v477, %v477
        %v500 = vmul.f32 %v478, %v478
        %v501 = vmul.f32 %v479, %v479
        %v502 = vmul.f32 %v480, %v480
        %v503 = vmul.f32 %v481, %v481
        %v504 = vmul.f32 %v482, %v482
        %v505 = vmul.f32 %v483, %v483
        %v506 = vmul.f32 %v484, %v484
        %v507 = vmul.f32 %v485, %v485
        %v508 = vmul.f32 %v486, %v486
        %v509 = vmul.f32 %v487, %v443
        %v510 = vmul.f32 %v488, %v444
        %v511 = vmul.f32 %v489, %v445
        %v512 = vmul.f32 %v490, %v446
        %v513 = vmul.f32 %v491, %v447
        %v514 = vmul.f32 %v492, %v448
        %v515 = vmul.f32 %v493, %v449
        %v516 = vmul.f32 %v494, %v450
        %v517 = vmul.f32 %v495, %v451
        %v518 = vmul.f32 %v496, %v452
        %v519 = vmul.f32 %v497, %v453
        %v520 = vmul.f32 %v498, %v454
        %v521 = vmul.f32 %v499, %v455
        %v522 = vmul.f32 %v500, %v456
        %v523 = vmul.f32 %v501, %v457
        %v524 = vmul.f32 %v502, %v458
        %v525 = vmul.f32 %v503, %v459
        %v526 = vmul.f32 %v504, %v460
        %v527 = vmul.f32 %v505, %v461
        %v528 = vmul.f32 %v506, %v462
        %v529 = vmul.f32 %v507, %v463
        %v530 = vmul.f32 %v508, %v464
        %v531 = vlaneseq
        %v532 = vshrl.u32 %v531, 7
        %v533 = vadd.s32 %v532, 8
        %v534 = vadd.s32 %v532, 16
        %v535 = vadd.s32 %v532, 24
        %v536 = vadd.s32 %v532, 32
        %v537 = vadd.s32 %v532, 40
        %v538 = vadd.s32 %v532, 48
        %v539 = vadd.s32 %v532, 56
        %v540 = vadd.s32 %v532, 64
        %v541 = vadd.s32 %v532, 72
        %v542 = vadd.s32 %v532, 80
        %v543 = vperm.slane %v257, 0
        %v544 = vperm.slane %v257, 4
        %v545 = vperm.slane %v543, 0
        %v546 = vperm.slane %v544, 0
        %vm547 = vcmp.eq.s32.totalorder %v532, %v545
        %vm548 = vcmp.eq.s32.totalorder %v532, %v546
        %vm549 = vcmp.eq.s32.totalorder %v533, %v545
        %vm550 = vcmp.eq.s32.totalorder %v533, %v546
        %vm551 = vcmp.eq.s32.totalorder %v534, %v545
        %vm552 = vcmp.eq.s32.totalorder %v534, %v546
        %vm553 = vcmp.eq.s32.totalorder %v535, %v545
        %vm554 = vcmp.eq.s32.totalorder %v535, %v546
        %vm555 = vcmp.eq.s32.totalorder %v536, %v545
        %vm556 = vcmp.eq.s32.totalorder %v536, %v546
        %vm557 = vcmp.eq.s32.totalorder %v537, %v545
        %vm558 = vcmp.eq.s32.totalorder %v537, %v546
        %vm559 = vcmp.eq.s32.totalorder %v538, %v545
        %vm560 = vcmp.eq.s32.totalorder %v538, %v546
        %vm561 = vcmp.eq.s32.totalorder %v539, %v545
        %vm562 = vcmp.eq.s32.totalorder %v539, %v546
        %vm563 = vcmp.eq.s32.totalorder %v540, %v545
        %vm564 = vcmp.eq.s32.totalorder %v540, %v546
        %vm565 = vcmp.eq.s32.totalorder %v541, %v545
        %vm566 = vcmp.eq.s32.totalorder %v541, %v546
        %vm567 = vcmp.eq.s32.totalorder %v542, %v545
        %vm568 = vcmp.eq.s32.totalorder %v542, %v546
        %v569 = vsel %vm547, %v509, 0.0
        %v570 = vsel %vm548, %v510, 0.0
        %v571 = vsel %vm549, %v511, 0.0
        %v572 = vsel %vm550, %v512, 0.0
        %v573 = vsel %vm551, %v513, 0.0
        %v574 = vsel %vm552, %v514, 0.0
        %v575 = vsel %vm553, %v515, 0.0
        %v576 = vsel %vm554, %v516, 0.0
        %v577 = vsel %vm555, %v517, 0.0
        %v578 = vsel %vm556, %v518, 0.0
        %v579 = vsel %vm557, %v519, 0.0
        %v580 = vsel %vm558, %v520, 0.0
        %v581 = vsel %vm559, %v521, 0.0
        %v582 = vsel %vm560, %v522, 0.0
        %v583 = vsel %vm561, %v523, 0.0
        %v584 = vsel %vm562, %v524, 0.0
        %v585 = vsel %vm563, %v525, 0.0
        %v586 = vsel %vm564, %v526, 0.0
        %v587 = vsel %vm565, %v527, 0.0
        %v588 = vsel %vm566, %v528, 0.0
        %v589 = vsel %vm567, %v529, 0.0
        %v590 = vsel %vm568, %v530, 0.0
        %v591 = vadd.f32 %v569, %v571
        %v592 = vadd.f32 %v591, %v573
        %v593 = vadd.f32 %v592, %v575
        %v594 = vadd.f32 %v593, %v577
        %v595 = vadd.f32 %v594, %v579
        %v596 = vadd.f32 %v595, %v581
        %v597 = vadd.f32 %v596, %v583
        %v598 = vadd.f32 %v597, %v585
        %v599 = vadd.f32 %v598, %v587
        %v600 = vsel %vm266, %v589, 0.0
        %v601 = vadd.f32 %v599, %v600
        %v602 = vrot.slane %v601, 4
        %v603 = vadd.f32 %v601, %v602
        %v604 = vrot.slane %v603, 2
        %v605 = vadd.f32 %v603, %v604
        %v606 = vrot.slane %v605, 1
        %v607 = vadd.f32 %v605, %v606
        %v608 = vadd.f32 %v570, %v572
        %v609 = vadd.f32 %v608, %v574
        %v610 = vadd.f32 %v609, %v576
        %v611 = vadd.f32 %v610, %v578
        %v612 = vadd.f32 %v611, %v580
        %v613 = vadd.f32 %v612, %v582
        %v614 = vadd.f32 %v613, %v584
        %v615 = vadd.f32 %v614, %v586
        %v616 = vadd.f32 %v615, %v588
        %v617 = vsel %vm266, %v590, 0.0
        %v618 = vadd.f32 %v616, %v617
        %v619 = vrot.slane %v618, 4
        %v620 = vadd.f32 %v618, %v619
        %v621 = vrot.slane %v620, 2
        %v622 = vadd.f32 %v620, %v621
        %v623 = vrot.slane %v622, 1
        %v624 = vadd.f32 %v622, %v623
        %v625 = vadd.f32 %v509, %v511
        %v626 = vadd.f32 %v625, %v513
        %v627 = vadd.f32 %v626, %v515
        %v628 = vadd.f32 %v627, %v517
        %v629 = vadd.f32 %v628, %v519
        %v630 = vadd.f32 %v629, %v521
        %v631 = vadd.f32 %v630, %v523
        %v632 = vadd.f32 %v631, %v525
        %v633 = vadd.f32 %v632, %v527
        %v634 = vsel %vm266, %v529, 0.0
        %v635 = vadd.f32 %v633, %v634
        %v636 = vrot.slane %v635, 4
        %v637 = vadd.f32 %v635, %v636
        %v638 = vrot.slane %v637, 2
        %v639 = vadd.f32 %v637, %v638
        %v640 = vrot.slane %v639, 1
        %v641 = vadd.f32 %v639, %v640
        %v642 = vadd.f32 %v510, %v512
        %v643 = vadd.f32 %v642, %v514
        %v644 = vadd.f32 %v643, %v516
        %v645 = vadd.f32 %v644, %v518
        %v646 = vadd.f32 %v645, %v520
        %v647 = vadd.f32 %v646, %v522
        %v648 = vadd.f32 %v647, %v524
        %v649 = vadd.f32 %v648, %v526
        %v650 = vadd.f32 %v649, %v528
        %v651 = vsel %vm266, %v530, 0.0
        %v652 = vadd.f32 %v650, %v651
        %v653 = vrot.slane %v652, 4
        %v654 = vadd.f32 %v652, %v653
        %v655 = vrot.slane %v654, 2
        %v656 = vadd.f32 %v654, %v655
        %v657 = vrot.slane %v656, 1
        %v658 = vadd.f32 %v656, %v657
        %v659 = vmul.f32 %v641, 1e-06
        %v660 = vmul.f32 %v658, 1e-06
        %v661 = vadd.f32 %v607, %v659
        %v662 = vadd.f32 %v624, %v660
        %664 = vst [vmem:[#allocation1] ss:$2 sm:$0xff] %v256
        %v665 = vld.sshfl [vmem:[#allocation1] sm:$0xff pattern:$0x75316420]
        %v666 = vld.sshfl [vmem:[#allocation1 + $0x8] sm:$0xff pattern:$0x75316420]
        %v667 = vrot.slane %v665, 1
        %v668 = vrot.slane %v666, 1
        %v671 = vmul.f32 %v661, %v667
        %v672 = vmul.f32 %v662, %v668
        %v673 = vld [vmem:[%s204] sm:$0xf]
        %v676 = vrot.slane %v672, 6
        %vm677 = vcmask 1041408
        %v678 = vsel %vm677, %v671, %v676
        %v680 = vadd.f32 %v673, %v678
        %681 = vst [vmem:[%s204] sm:$0xf] %v680
        %s682 = sand.u32 %s105, 1
        %s683 = scalar_lea.sflag [#allocation3], %s682
        %s684 = sand.u32 %s105, 1
        %s685 = smul.addr %s684, 4
        %s686 = scalar_lea.vmem [#allocation2], %s685
        // Predicated region
        $region33: #{tpu_custom_call.1} parent=27 // pred_check
          %p687 = pneg %p115
        $region34: #{tpu_custom_call.1} parent=27 // pred_check_branch
          %689 = sbr.rel (%p687) target = $region36
        $region35: #{tpu_custom_call.1} parent=27 // pred_region
          %691 = vsyncadd %s683, 0
          %s692 = smul.addr %s22, 2
          %s693 = smul.addr %s21, 4
          %s694 = sadd.s32 %s692, %s693
          %s695 = smul.addr %s694, 2
          %s696 = scalar_lea.hbm %s2, %s695
          %s698 = sshll.u32 %s686, 4
          %s699 = int_to_ptr.vmem [resolvable:$true] %s698
          %s700 = sshll.u32 %s696, 4
          %s701 = int_to_ptr.hbm [resolvable:$true] %s700
          %703 = dma.vmem_to_hbm [thread:$0]  %s699, 64, %s701, %s683
        $region36: #{tpu_custom_call.1} parent=27 // pred_fallthru
          _
      $region28: #{tpu_custom_call.1} parent=5 // pred_fallthru
        _
      %p704 = scmp.le.s32.totalorder 2, %s11
      // Predicated region
      $region37: #{tpu_custom_call.1} parent=5 // pred_check
        %p705 = pneg %p704
      $region38: #{tpu_custom_call.1} parent=5 // pred_check_branch
        %707 = sbr.rel (%p705) target = $region40
      $region39: #{tpu_custom_call.1} parent=5 // pred_region
        %s708 = ssub.s32 %s11, 2
        // Predicated region
        $region41: #{tpu_custom_call.1} parent=39 // pred_check
          %p709 = pneg %p121
        $region42: #{tpu_custom_call.1} parent=39 // pred_check_branch
          %711 = sbr.rel (%p709) target = $region44
        $region43: #{tpu_custom_call.1} parent=39 // pred_region
          %s712 = sand.u32 %s106, 1
          %s713 = scalar_lea.sflag [#allocation3], %s712
          %s714 = sand.u32 %s106, 1
          %s715 = smul.addr %s714, 4
          %s716 = scalar_lea.vmem [#allocation2], %s715
          %718 = dma.done %s713, 64
        $region44: #{tpu_custom_call.1} parent=39 // pred_fallthru
          _
      $region40: #{tpu_custom_call.1} parent=5 // pred_fallthru
        _
    $region6: #{tpu_custom_call.1} parent=1 // loop_footer
      %s15 = sadd.s32 1, %s11
    $region7: #{tpu_custom_call.1} parent=1 // loop_footer_branch
      %10 = sbr.rel target = $region3
    $region8: #{tpu_custom_call.1} parent=1 // loop_exit
      _
    %719 = vsyncpa [#allocation3], 1
    %s720 = scalar_lea.sflag [#allocation3], 1
    %721 = vsyncpa %s720, 1

</llo_original>
